<compile_context>
chip_gen: v7x
topology: tpu7x:2x2x1
jax: 0.10.0
libtpu: 0.0.40
codegen_flags: <defaults>
</compile_context>

<pallas_src>
import jax
import jax.numpy as jnp
from jax.experimental import pallas as pl
from jax.experimental.pallas import tpu as pltpu


# --------------------- stage 1: meta_net MLP (one-shot) ----------------------
def _meta_net_kernel(im_ref, w1_ref, b1_ref, w2_ref, b2_ref, ctx_ref,
                     bias_ref, ctx_shifted_ref):
    # Tiny MLP: runs once (not per grid step), so f32 MXU cost is irrelevant.
    x = im_ref[...].astype(jnp.float32)                                   # (B, vis_dim)
    h = jnp.dot(x, w1_ref[...].astype(jnp.float32),
                preferred_element_type=jnp.float32)                       # (B, hidden)
    h = jnp.maximum(h + b1_ref[...].astype(jnp.float32), 0.0)             # ReLU
    bias = jnp.dot(h, w2_ref[...].astype(jnp.float32),
                   preferred_element_type=jnp.float32)                    # (B, ctx_dim)
    bias = bias + b2_ref[...].astype(jnp.float32)
    bias_ref[...] = bias.astype(bias_ref.dtype)
    ctx_shifted_ref[...] = (ctx_ref[...].astype(jnp.float32)[None, :, :]
                            + bias[:, None, :]).astype(ctx_shifted_ref.dtype)


# --------------------- stage 2: prompt assembly (class-tiled) ----------------
def _prompt_assembly_kernel(ctx_shifted_ref, pre_ref, suf_ref, prompts_ref):
    out_dt = prompts_ref.dtype
    B, c_tile, n_tkn, ctx_dim = prompts_ref.shape
    l_pre = pre_ref.shape[1]
    n_ctx = ctx_shifted_ref.shape[1]
    l_suf = suf_ref.shape[1]

    pre = pre_ref[...].astype(out_dt)            # (c_tile, l_pre, ctx_dim)
    suf = suf_ref[...].astype(out_dt)            # (c_tile, l_suf, ctx_dim)
    ctx_s = ctx_shifted_ref[...].astype(out_dt)  # (B, n_ctx, ctx_dim)

    # Whole-batch slice stores (3 stores total; no concatenate, no per-b loop).
    prompts_ref[:, :, 0:l_pre, :] = jnp.broadcast_to(
        pre[None, :, :, :], (B, c_tile, l_pre, ctx_dim))
    prompts_ref[:, :, l_pre:l_pre + n_ctx, :] = jnp.broadcast_to(
        ctx_s[:, None, :, :], (B, c_tile, n_ctx, ctx_dim))
    prompts_ref[:, :, l_pre + n_ctx:n_tkn, :] = jnp.broadcast_to(
        suf[None, :, :, :], (B, c_tile, l_suf, ctx_dim))


# ----------------------------- tiling helpers --------------------------------
def _vmem_budget():
    """Generation-aware (block_budget, vmem_limit) from reported VMEM capacity."""
    cap = 64 * 1024 * 1024                    # conservative default (v7x per-TC)
    try:
        info = pltpu.get_tpu_info()
        cap = int(getattr(info, "vmem_capacity_bytes", cap))
    except Exception:
        pass
    block_budget = cap // 2                   # ~32 MiB v7x, ~64 MiB v5e/v6e
    vmem_limit = (cap * 3) // 4               # ~48 MiB v7x, ~96 MiB v5e/v6e
    return block_budget, vmem_limit


def _choose_class_tile(B, n_cls, n_tkn, l_pre, l_suf, ctx_dim, itemsize, budget):
    """Largest class tile whose pipeline footprint fits the budget.

    Footprint per class in the tile: double-buffered output rows (2x) + ~1x
    output rows of temp headroom + double-buffered prefix/suffix input rows.
    Capped at ceil(n_cls/2) so v7x megacore always has >= 2 grid steps.
    """
    per_class = itemsize * (3 * B * n_tkn * ctx_dim + 2 * (l_pre + l_suf) * ctx_dim)
    cap = max(1, budget // max(per_class, 1))
    if n_cls >= 2:
        cap = min(cap, (n_cls + 1) // 2)
    return int(max(1, min(cap, n_cls)))


# ----------------------------- module forward (wrapper) ----------------------
def prompt_learner_forward(im_features, params):
    """Returns (prompts, ctx, bias) matching the PyTorch module's forward."""
    # TODO(synk): torch-side NaN raises / dtype prints are host-side control
    # flow with no Pallas equivalent; omitted.
    ctx = params["ctx"]
    w1, b1, w2, b2 = params["w1"], params["b1"], params["w2"], params["b2"]
    pre, suf = params["token_prefix"], params["token_suffix"]

    B, vis_dim = im_features.shape
    n_ctx, ctx_dim = ctx.shape
    n_cls, l_pre, _ = pre.shape
    l_suf = suf.shape[1]
    n_tkn = l_pre + n_ctx + l_suf

    out_dtype = pre.dtype                 # CLIP embedding dtype (fp16/bf16/f32)
    bias_dtype = w1.dtype                 # meta_net dtype
    itemsize = jnp.dtype(out_dtype).itemsize

    # ---- Stage 1: one-shot meta_net MLP + ctx shift (tiny, runs once). ----
    bias, ctx_shifted = pl.pallas_call(
        _meta_net_kernel,
        out_shape=(
            jax.ShapeDtypeStruct((B, ctx_dim), bias_dtype),
            jax.ShapeDtypeStruct((B, n_ctx, ctx_dim), out_dtype),
        ),
    )(im_features, w1, b1, w2, b2, ctx)

    # ---- Stage 2: HBM-writeback-bound prompt assembly, class-tiled grid. ----
    block_budget, vmem_limit = _vmem_budget()
    c_tile = _choose_class_tile(B, n_cls, n_tkn, l_pre, l_suf, ctx_dim,
                                itemsize, block_budget)
    grid = (pl.cdiv(n_cls, c_tile),)      # partial last block handled by Pallas

    prompts = pl.pallas_call(
        _prompt_assembly_kernel,
        out_shape=jax.ShapeDtypeStruct((B, n_cls, n_tkn, ctx_dim), out_dtype),
        grid=grid,
        in_specs=[
            # Resident input: constant block index -> DMA'd once, kept in VMEM.
            pl.BlockSpec((B, n_ctx, ctx_dim), lambda c: (0, 0, 0)),
            # Class-tiled inputs: each class row read from HBM exactly once.
            pl.BlockSpec((c_tile, l_pre, ctx_dim), lambda c: (c, 0, 0)),
            pl.BlockSpec((c_tile, l_suf, ctx_dim), lambda c: (c, 0, 0)),
        ],
        out_specs=pl.BlockSpec((B, c_tile, n_tkn, ctx_dim),
                               lambda c: (0, c, 0, 0)),
        compiler_params=pltpu.CompilerParams(
            dimension_semantics=("parallel",),
            vmem_limit_bytes=int(vmem_limit)),
    )(ctx_shifted, pre, suf)

    ctx_out = ctx[None, :, :]             # (1, n_ctx, ctx_dim)
    bias_out = bias[:, None, :]           # (B, 1, ctx_dim)
    return prompts, ctx_out, bias_out


# ----------------------------- pure-JAX reference ----------------------------
def prompt_learner_reference(im_features, params):
    h = jnp.maximum(im_features @ params["w1"] + params["b1"], 0.0)
    bias = h @ params["w2"] + params["b2"]                    # (B, ctx_dim)
    ctx_shifted = params["ctx"][None] + bias[:, None, :]      # (B, n_ctx, ctx_dim)
    B = im_features.shape[0]
    n_cls = params["token_prefix"].shape[0]
    pre = jnp.broadcast_to(params["token_prefix"][None],
                           (B,) + params["token_prefix"].shape)
    suf = jnp.broadcast_to(params["token_suffix"][None],
                           (B,) + params["token_suffix"].shape)
    ctx_b = jnp.broadcast_to(ctx_shifted[:, None],
                             (B, n_cls) + ctx_shifted.shape[1:])
    prompts = jnp.concatenate([pre, ctx_b, suf], axis=2)
    return prompts, params["ctx"][None], bias[:, None, :]


if __name__ == "__main__":
    # Small shapes consistent with the module (CLIP-like, scaled down).
    B = 2          # batch of image features
    vis_dim = 128  # clip_model.visual.output_dim
    hidden = vis_dim // 16                  # meta_net bottleneck = 8
    ctx_dim = 128  # clip_model.ln_final.weight.shape[0]
    n_ctx = 4      # cfg.TRAINER.COCOOP.N_CTX
    n_cls = 3      # number of classnames (odd -> exercises the partial tail tile)
    n_tkn = 16     # tokenized prompt length (stand-in for CLIP's 77)
    l_suf = n_tkn - 1 - n_ctx

    key = jax.random.PRNGKey(0)
    ks = jax.random.split(key, 8)

    params = {
        # ctx_vectors ~ N(0, 0.02) as in __init__
        "ctx": 0.02 * jax.random.normal(ks[0], (n_ctx, ctx_dim), jnp.float32),
        # meta_net: Linear(vis_dim, hidden) -> ReLU -> Linear(hidden, ctx_dim)
        "w1": 0.05 * jax.random.normal(ks[1], (vis_dim, hidden), jnp.float32),
        "b1": 0.01 * jax.random.normal(ks[2], (1, hidden), jnp.float32),
        "w2": 0.05 * jax.random.normal(ks[3], (hidden, ctx_dim), jnp.float32),
        "b2": 0.01 * jax.random.normal(ks[4], (1, ctx_dim), jnp.float32),
        # frozen CLIP token embeddings of SOS / class-name+EOS tokens
        "token_prefix": jax.random.normal(ks[5], (n_cls, 1, ctx_dim), jnp.float32),
        "token_suffix": jax.random.normal(ks[6], (n_cls, l_suf, ctx_dim), jnp.float32),
    }
    im_features = jax.random.normal(ks[7], (B, vis_dim), jnp.float32)

    prompts, ctx_out, bias_out = jax.block_until_ready(
        prompt_learner_forward(im_features, params))

    # Correctness check against a pure-JAX reference.
    ref_prompts, ref_ctx, ref_bias = prompt_learner_reference(im_features, params)
    assert prompts.shape == (B, n_cls, n_tkn, ctx_dim)
    assert ctx_out.shape == (1, n_ctx, ctx_dim)
    assert bias_out.shape == (B, 1, ctx_dim)
    assert jnp.allclose(prompts, ref_prompts, atol=1e-5, rtol=1e-5)
    assert jnp.allclose(ctx_out, ref_ctx, atol=1e-5, rtol=1e-5)
    assert jnp.allclose(bias_out, ref_bias, atol=1e-5, rtol=1e-5)

    print("KERNEL_OK")
</pallas_src>

<mosaic_0001>
module attributes {stable_mosaic.version = 11 : i64} {
  func.func @_meta_net_kernel(%arg0: memref<2x128xf32, #tpu.memory_space<vmem>>, %arg1: memref<128x8xf32, #tpu.memory_space<vmem>>, %arg2: memref<1x8xf32, #tpu.memory_space<vmem>>, %arg3: memref<8x128xf32, #tpu.memory_space<vmem>>, %arg4: memref<1x128xf32, #tpu.memory_space<vmem>>, %arg5: memref<4x128xf32, #tpu.memory_space<vmem>>, %arg6: memref<2x128xf32, #tpu.memory_space<vmem>>, %arg7: memref<2x4x128xf32, #tpu.memory_space<vmem>>) attributes {dimension_semantics = [], scalar_prefetch = 0 : i64, scratch_operands = 0 : i64, tpu.core_type = #tpu.core_type<tc>} {
    %c0 = arith.constant 0 : index
    %c0_0 = arith.constant 0 : index
    %0 = vector.load %arg0[%c0, %c0_0] : memref<2x128xf32, #tpu.memory_space<vmem>>, vector<2x128xf32>
    %c0_1 = arith.constant 0 : index
    %c0_2 = arith.constant 0 : index
    %1 = vector.load %arg1[%c0_1, %c0_2] : memref<128x8xf32, #tpu.memory_space<vmem>>, vector<128x8xf32>
    %cst = arith.constant dense<0.000000e+00> : vector<2x8xf32>
    %2 = tpu.matmul %0, %1, %cst {dimension_numbers = #tpu.dot_dimension_numbers<[1], [0], [0], [1], [0, 0, 1, 1], [], []>} : vector<2x128xf32>, vector<128x8xf32>, vector<2x8xf32> -> vector<2x8xf32>
    %c0_3 = arith.constant 0 : index
    %c0_4 = arith.constant 0 : index
    %3 = vector.load %arg2[%c0_3, %c0_4] : memref<1x8xf32, #tpu.memory_space<vmem>>, vector<1x8xf32>
    %4 = vector.broadcast %3 : vector<1x8xf32> to vector<2x8xf32>
    %5 = arith.addf %2, %4 : vector<2x8xf32>
    %cst_5 = arith.constant 0.000000e+00 : f32
    %6 = vector.broadcast %cst_5 : f32 to vector<2x8xf32>
    %7 = arith.maximumf %5, %6 : vector<2x8xf32>
    %c0_6 = arith.constant 0 : index
    %c0_7 = arith.constant 0 : index
    %8 = vector.load %arg3[%c0_6, %c0_7] : memref<8x128xf32, #tpu.memory_space<vmem>>, vector<8x128xf32>
    %cst_8 = arith.constant dense<0.000000e+00> : vector<2x128xf32>
    %9 = tpu.matmul %7, %8, %cst_8 {dimension_numbers = #tpu.dot_dimension_numbers<[1], [0], [0], [1], [0, 0, 1, 1], [], []>} : vector<2x8xf32>, vector<8x128xf32>, vector<2x128xf32> -> vector<2x128xf32>
    %c0_9 = arith.constant 0 : index
    %c0_10 = arith.constant 0 : index
    %10 = vector.load %arg4[%c0_9, %c0_10] : memref<1x128xf32, #tpu.memory_space<vmem>>, vector<1x128xf32>
    %11 = vector.broadcast %10 : vector<1x128xf32> to vector<2x128xf32>
    %12 = arith.addf %9, %11 : vector<2x128xf32>
    %c0_11 = arith.constant 0 : index
    %c0_12 = arith.constant 0 : index
    %13 = vector.load %arg6[%c0_11, %c0_12] : memref<2x128xf32, #tpu.memory_space<vmem>>, vector<2x128xf32>
    tpu.vector_store %arg6[%c0_11, %c0_12], %12 {strides = array<i32>} : memref<2x128xf32, #tpu.memory_space<vmem>>, vector<2x128xf32>,
    %c0_13 = arith.constant 0 : index
    %c0_14 = arith.constant 0 : index
    %14 = vector.load %arg5[%c0_13, %c0_14] : memref<4x128xf32, #tpu.memory_space<vmem>>, vector<4x128xf32>
    %15 = vector.shape_cast %14 : vector<4x128xf32> to vector<1x4x128xf32>
    %16 = vector.shape_cast %12 : vector<2x128xf32> to vector<2x1x128xf32>
    %17 = vector.broadcast %15 : vector<1x4x128xf32> to vector<2x4x128xf32>
    %18 = vector.broadcast %16 : vector<2x1x128xf32> to vector<2x4x128xf32>
    %19 = arith.addf %17, %18 : vector<2x4x128xf32>
    %c0_15 = arith.constant 0 : index
    %c0_16 = arith.constant 0 : index
    %c0_17 = arith.constant 0 : index
    %20 = vector.load %arg7[%c0_15, %c0_16, %c0_17] : memref<2x4x128xf32, #tpu.memory_space<vmem>>, vector<2x4x128xf32>
    tpu.vector_store %arg7[%c0_15, %c0_16, %c0_17], %19 {strides = array<i32>} : memref<2x4x128xf32, #tpu.memory_space<vmem>>, vector<2x4x128xf32>,
    return
  }
}

</mosaic_0001>

<llo_original>
// kernel: tpu_custom_call.1
$region0: #{tpu_custom_call.1}
  #allocation0 [shape = 'u32[]', space=smem, size = 0x4, offset = 0x4, fixed_abs, tag = 'smem constant byte address 0x4 - core index']
  #allocation1 [shape = 'u32[144,128]{1,0:T(1,128)}', space=vmem, size = 0x12000, scoped, tag = 'internal scratch']
  %s0 = inlined_call_operand.vmem [shape: f32[2,128], index: 0, kind: input, shape index: {}]
  %s1 = inlined_call_operand.vmem [shape: f32[128,8], index: 1, kind: input, shape index: {}]
  %s2 = inlined_call_operand.vmem [shape: f32[1,8], index: 2, kind: input, shape index: {}]
  %s3 = inlined_call_operand.vmem [shape: f32[8,128], index: 3, kind: input, shape index: {}]
  %s4 = inlined_call_operand.vmem [shape: f32[1,128], index: 4, kind: input, shape index: {}]
  %s5 = inlined_call_operand.vmem [shape: f32[4,128], index: 5, kind: input, shape index: {}]
  %s6 = inlined_call_operand.hbm [shape: f32[2,128], index: 6, kind: output, shape index: {0}]
  %s7 = inlined_call_operand.hbm [shape: f32[2,4,128], index: 7, kind: output, shape index: {1}]
  %8 = xla_tuple %s6, %s7
  %s9 = sld [smem:[#allocation0]]
  $region42: #{tpu_custom_call.1} parent=0
    _
  %s11 = ssub.s32 1, %s9
  %s12 = scalar_select 0, %s11, %s9
  $region1: #{tpu_custom_call.1} parent=0
    #allocation2 [shape = 'u8[1024]{0}', space=vmem, size = 0x400, scoped, tag = 'output window, operand 0, single buffered']
    #allocation3 [shape = 's32[1]{0}', space=sflag, size = 0x4, scoped, tag = 'scoped memory for tpu_custom_call.1']
    #allocation4 [shape = 'u8[4096]{0}', space=vmem, size = 0x1000, scoped, tag = 'output window, operand 1, single buffered']
    #allocation5 [shape = 's32[1]{0}', space=sflag, size = 0x4, scoped, tag = 'scoped memory for tpu_custom_call.1']
    %13 = vsyncpa [#allocation3], 0
    %14 = vsyncpa [#allocation5], 0
    // Predicated region
    $region2: #{tpu_custom_call.1} parent=1 // pred_check
      _
    $region3: #{tpu_custom_call.1} parent=1 // pred_check_branch
      %16 = sbr.rel (0) target = $region5
    $region4: #{tpu_custom_call.1} parent=1 // pred_region
      _
    $region5: #{tpu_custom_call.1} parent=1 // pred_fallthru
      _
    // Predicated region
    $region6: #{tpu_custom_call.1} parent=1 // pred_check
      _
    $region7: #{tpu_custom_call.1} parent=1 // pred_check_branch
      %18 = sbr.rel (0) target = $region9
    $region8: #{tpu_custom_call.1} parent=1 // pred_region
      _
    $region9: #{tpu_custom_call.1} parent=1 // pred_fallthru
      _
    // Predicated region
    $region10: #{tpu_custom_call.1} parent=1 // pred_check
      _
    $region11: #{tpu_custom_call.1} parent=1 // pred_check_branch
      %20 = sbr.rel (0) target = $region13
    $region12: #{tpu_custom_call.1} parent=1 // pred_region
      _
    $region13: #{tpu_custom_call.1} parent=1 // pred_fallthru
      _
    // Predicated region
    $region14: #{tpu_custom_call.1} parent=1 // pred_check
      _
    $region15: #{tpu_custom_call.1} parent=1 // pred_check_branch
      %22 = sbr.rel (0) target = $region17
    $region16: #{tpu_custom_call.1} parent=1 // pred_region
      _
    $region17: #{tpu_custom_call.1} parent=1 // pred_fallthru
      _
    // Predicated region
    $region18: #{tpu_custom_call.1} parent=1 // pred_check
      _
    $region19: #{tpu_custom_call.1} parent=1 // pred_check_branch
      %24 = sbr.rel (0) target = $region21
    $region20: #{tpu_custom_call.1} parent=1 // pred_region
      _
    $region21: #{tpu_custom_call.1} parent=1 // pred_fallthru
      _
    // Predicated region
    $region22: #{tpu_custom_call.1} parent=1 // pred_check
      _
    $region23: #{tpu_custom_call.1} parent=1 // pred_check_branch
      %26 = sbr.rel (0) target = $region25
    $region24: #{tpu_custom_call.1} parent=1 // pred_region
      _
    $region25: #{tpu_custom_call.1} parent=1 // pred_fallthru
      _
    %v27 = vld [vmem:[%s0] sm:$0x3]
    %v28 = vld [vmem:[%s1] sm:$0xff]
    %v29 = vld [vmem:[%s1 + $0x8] sm:$0xff]
    %v30 = vld [vmem:[%s1 + $0x10] sm:$0xff]
    %v31 = vld [vmem:[%s1 + $0x18] sm:$0xff]
    %v32 = vld [vmem:[%s1 + $0x20] sm:$0xff]
    %v33 = vld [vmem:[%s1 + $0x28] sm:$0xff]
    %v34 = vld [vmem:[%s1 + $0x30] sm:$0xff]
    %v35 = vld [vmem:[%s1 + $0x38] sm:$0xff]
    %v36 = vld [vmem:[%s1 + $0x40] sm:$0xff]
    %v37 = vld [vmem:[%s1 + $0x48] sm:$0xff]
    %v38 = vld [vmem:[%s1 + $0x50] sm:$0xff]
    %v39 = vld [vmem:[%s1 + $0x58] sm:$0xff]
    %v40 = vld [vmem:[%s1 + $0x60] sm:$0xff]
    %v41 = vld [vmem:[%s1 + $0x68] sm:$0xff]
    %v42 = vld [vmem:[%s1 + $0x70] sm:$0xff]
    %v43 = vld [vmem:[%s1 + $0x78] sm:$0xff]
    %v44 = vld [vmem:[%s2] sm:$0x1]
    %v46 = vlaneseq
    %v47 = vshrl.u32 %v46, 7
    %v48 = vsub.s32 0, %v47
    %v49 = vrot.slane %v44, %v48
    %51 = vmatprep.subr.mxu0 0.0
    %52 = vmatpush1.msra.mxu0 %v28
    %53 = vmatprep.subr.mxu0 0.0
    %54 = vmatpush1.msra.mxu0 %v29
    %55 = vmatprep.subr.mxu0 0.0
    %56 = vmatpush1.msra.mxu0 %v30
    %57 = vmatprep.subr.mxu0 0.0
    %58 = vmatpush1.msra.mxu0 %v31
    %59 = vmatprep.subr.mxu0 0.0
    %60 = vmatpush1.msra.mxu0 %v32
    %61 = vmatprep.subr.mxu0 0.0
    %62 = vmatpush1.msra.mxu0 %v33
    %63 = vmatprep.subr.mxu0 0.0
    %64 = vmatpush1.msra.mxu0 %v34
    %65 = vmatprep.subr.mxu0 0.0
    %66 = vmatpush1.msra.mxu0 %v35
    %67 = vmatprep.subr.mxu0 0.0
    %68 = vmatpush1.msra.mxu0 %v36
    %69 = vmatprep.subr.mxu0 0.0
    %70 = vmatpush1.msra.mxu0 %v37
    %71 = vmatprep.subr.mxu0 0.0
    %72 = vmatpush1.msra.mxu0 %v38
    %73 = vmatprep.subr.mxu0 0.0
    %74 = vmatpush1.msra.mxu0 %v39
    %75 = vmatprep.subr.mxu0 0.0
    %76 = vmatpush1.msra.mxu0 %v40
    %77 = vmatprep.subr.mxu0 0.0
    %78 = vmatpush1.msra.mxu0 %v41
    %79 = vmatprep.subr.mxu0 0.0
    %80 = vmatpush1.msra.mxu0 %v42
    %81 = vmatprep.subr.mxu0 0.0
    %82 = vmatpush1.msra.mxu0 %v43
    %83 = vmatprep.subr.mxu0 0.0
    %84 = vmatpush1.msra.mxu0 0.0
    %85 = vmatprep.subr.mxu0 0.0
    %86 = vmatpush1.msra.mxu0 0.0
    %87 = vmatprep.subr.mxu0 0.0
    %88 = vmatpush1.msra.mxu0 0.0
    %89 = vmatprep.subr.mxu0 0.0
    %90 = vmatpush1.msra.mxu0 0.0
    %91 = vmatprep.subr.mxu0 0.0
    %92 = vmatpush1.msra.mxu0 0.0
    %93 = vmatprep.subr.mxu0 0.0
    %94 = vmatpush1.msra.mxu0 0.0
    %95 = vmatprep.subr.mxu0 0.0
    %96 = vmatpush1.msra.mxu0 0.0
    %97 = vmatprep.subr.mxu0 0.0
    %98 = vmatpush1.msra.mxu0 0.0
    %99 = vmatprep.subr.mxu0 0.0
    %100 = vmatpush1.msra.mxu0 0.0
    %101 = vmatprep.subr.mxu0 0.0
    %102 = vmatpush1.msra.mxu0 0.0
    %103 = vmatprep.subr.mxu0 0.0
    %104 = vmatpush1.msra.mxu0 0.0
    %105 = vmatprep.subr.mxu0 0.0
    %106 = vmatpush1.msra.mxu0 0.0
    %107 = vmatprep.subr.mxu0 0.0
    %108 = vmatpush1.msra.mxu0 0.0
    %109 = vmatprep.subr.mxu0 0.0
    %110 = vmatpush1.msra.mxu0 0.0
    %111 = vmatprep.subr.mxu0 0.0
    %112 = vmatpush1.msra.mxu0 0.0
    %113 = vmatprep.subr.mxu0 0.0
    %114 = vmatpush1.msra.mxu0 0.0
    %115 = vmatprep.mubr.f32.mxu0 0.0
    %116 = vmatmul.mubr.f32.gmra.mrb[0].mxu0 %v27
    %v117 = vpop.f32.mrb[0].mxu0
    %v118 = vadd.f32 %v49, %v117
    %v119 = vpop.f32.mrb[0].mxu0
    %120 = vdwg.mxu0
    %v121 = vmax.f32 %v118, 0.0
    %v122 = vld [vmem:[%s3] sm:$0xff]
    %v123 = vld [vmem:[%s4] sm:$0x1]
    %v125 = vlaneseq
    %v126 = vshrl.u32 %v125, 7
    %v127 = vsub.s32 0, %v126
    %v128 = vrot.slane %v123, %v127
    %vm130 = vcmask 64512
    %v132 = vsel %vm130, %v121, 0
    %134 = vmatprep.subr.mxu0 0.0
    %135 = vmatpush1.msra.mxu0 %v122
    %136 = vmatprep.subr.mxu0 0.0
    %137 = vmatpush1.msra.mxu0 0.0
    %138 = vmatprep.subr.mxu0 0.0
    %139 = vmatpush1.msra.mxu0 0.0
    %140 = vmatprep.subr.mxu0 0.0
    %141 = vmatpush1.msra.mxu0 0.0
    %142 = vmatprep.subr.mxu0 0.0
    %143 = vmatpush1.msra.mxu0 0.0
    %144 = vmatprep.subr.mxu0 0.0
    %145 = vmatpush1.msra.mxu0 0.0
    %146 = vmatprep.subr.mxu0 0.0
    %147 = vmatpush1.msra.mxu0 0.0
    %148 = vmatprep.subr.mxu0 0.0
    %149 = vmatpush1.msra.mxu0 0.0
    %150 = vmatprep.subr.mxu0 0.0
    %151 = vmatpush1.msra.mxu0 0.0
    %152 = vmatprep.subr.mxu0 0.0
    %153 = vmatpush1.msra.mxu0 0.0
    %154 = vmatprep.subr.mxu0 0.0
    %155 = vmatpush1.msra.mxu0 0.0
    %156 = vmatprep.subr.mxu0 0.0
    %157 = vmatpush1.msra.mxu0 0.0
    %158 = vmatprep.subr.mxu0 0.0
    %159 = vmatpush1.msra.mxu0 0.0
    %160 = vmatprep.subr.mxu0 0.0
    %161 = vmatpush1.msra.mxu0 0.0
    %162 = vmatprep.subr.mxu0 0.0
    %163 = vmatpush1.msra.mxu0 0.0
    %164 = vmatprep.subr.mxu0 0.0
    %165 = vmatpush1.msra.mxu0 0.0
    %166 = vmatprep.subr.mxu0 0.0
    %167 = vmatpush1.msra.mxu0 0.0
    %168 = vmatprep.subr.mxu0 0.0
    %169 = vmatpush1.msra.mxu0 0.0
    %170 = vmatprep.subr.mxu0 0.0
    %171 = vmatpush1.msra.mxu0 0.0
    %172 = vmatprep.subr.mxu0 0.0
    %173 = vmatpush1.msra.mxu0 0.0
    %174 = vmatprep.subr.mxu0 0.0
    %175 = vmatpush1.msra.mxu0 0.0
    %176 = vmatprep.subr.mxu0 0.0
    %177 = vmatpush1.msra.mxu0 0.0
    %178 = vmatprep.subr.mxu0 0.0
    %179 = vmatpush1.msra.mxu0 0.0
    %180 = vmatprep.subr.mxu0 0.0
    %181 = vmatpush1.msra.mxu0 0.0
    %182 = vmatprep.subr.mxu0 0.0
    %183 = vmatpush1.msra.mxu0 0.0
    %184 = vmatprep.subr.mxu0 0.0
    %185 = vmatpush1.msra.mxu0 0.0
    %186 = vmatprep.subr.mxu0 0.0
    %187 = vmatpush1.msra.mxu0 0.0
    %188 = vmatprep.subr.mxu0 0.0
    %189 = vmatpush1.msra.mxu0 0.0
    %190 = vmatprep.subr.mxu0 0.0
    %191 = vmatpush1.msra.mxu0 0.0
    %192 = vmatprep.subr.mxu0 0.0
    %193 = vmatpush1.msra.mxu0 0.0
    %194 = vmatprep.subr.mxu0 0.0
    %195 = vmatpush1.msra.mxu0 0.0
    %196 = vmatprep.subr.mxu0 0.0
    %197 = vmatpush1.msra.mxu0 0.0
    %198 = vmatprep.mubr.f32.mxu0 0.0
    %199 = vmatmul.mubr.f32.gmra.mrb[0].mxu0 %v132
    %v200 = vpop.f32.mrb[0].mxu0
    %v201 = vadd.f32 %v128, %v200
    %v202 = vpop.f32.mrb[0].mxu0
    %203 = vdwg.mxu0
    %204 = vst [vmem:[#allocation2] sm:$0x3] %v201
    %v205 = vld [vmem:[%s5] sm:$0xf]
    %v208 = vunpack.c.l.s4 1966171168
    %v209 = vunpack.c.0.s8 %v208
    %v210 = vlaneseq
    %v211 = vshrl.u32 %v210, 7
    %v212 = vsub.s32 %v209, %v211
    %v213 = vrot.slane %v201, %v212
    %v214 = vcombine.high %v213, %v213
    %v216 = vunpack.c.l.s4 1966171168
    %v217 = vunpack.c.0.s8 %v216
    %v218 = vlaneseq
    %v219 = vshrl.u32 %v218, 7
    %v220 = vsub.s32 %v217, %v219
    %v221 = vrot.slane %v213, %v220
    %v223 = vunpack.c.l.s4 1966171168
    %v224 = vunpack.c.0.s8 %v223
    %v225 = vlaneseq
    %v226 = vshrl.u32 %v225, 7
    %v227 = vsub.s32 %v224, %v226
    %v228 = vrot.slane %v214, %v227
    %v229 = vlaneseq
    %v230 = vshrl.u32 %v229, 7
    %v231 = vsub.s32 0, %v230
    %v232 = vrot.slane %v221, %v231
    %v233 = vlaneseq
    %v234 = vshrl.u32 %v233, 7
    %v235 = vsub.s32 0, %v234
    %v236 = vrot.slane %v228, %v235
    %v239 = vadd.f32 %v205, %v232
    %v240 = vadd.f32 %v205, %v236
    %241 = vst [vmem:[#allocation4] sm:$0xf] %v239
    %242 = vst [vmem:[#allocation4 + $0x4] sm:$0xf] %v240
    // Predicated region
    $region26: #{tpu_custom_call.1} parent=1 // pred_check
      _
    $region27: #{tpu_custom_call.1} parent=1 // pred_check_branch
      %244 = sbr.rel (0) target = $region29
    $region28: #{tpu_custom_call.1} parent=1 // pred_region
      %s246 = ssub.s32 32, 32
      %247 = vsyncadd [#allocation3], %s246
      %s249 = sshll.u32 [#allocation2], 4
      %s250 = int_to_ptr.vmem [resolvable:$true] %s249
      %252 = dma.vmem_to_hbm [thread:$0]  %s250, 32, %s6, [#allocation3]
    $region29: #{tpu_custom_call.1} parent=1 // pred_fallthru
      _
    // Predicated region
    $region30: #{tpu_custom_call.1} parent=1 // pred_check
      _
    $region31: #{tpu_custom_call.1} parent=1 // pred_check_branch
      %254 = sbr.rel (0) target = $region33
    $region32: #{tpu_custom_call.1} parent=1 // pred_region
      %s256 = ssub.s32 128, 128
      %257 = vsyncadd [#allocation5], %s256
      %s258 = sshll.u32 [#allocation4], 4
      %s259 = int_to_ptr.vmem [resolvable:$true] %s258
      %264 = dma.vmem_to_hbm [thread:$0]  %s259, 128, %s7, [#allocation5], 64, 64, 4
    $region33: #{tpu_custom_call.1} parent=1 // pred_fallthru
      _
    // Predicated region
    $region34: #{tpu_custom_call.1} parent=1 // pred_check
      _
    $region35: #{tpu_custom_call.1} parent=1 // pred_check_branch
      %266 = sbr.rel (0) target = $region37
    $region36: #{tpu_custom_call.1} parent=1 // pred_region
      %267 = dma.done [#allocation3], 32
    $region37: #{tpu_custom_call.1} parent=1 // pred_fallthru
      _
    // Predicated region
    $region38: #{tpu_custom_call.1} parent=1 // pred_check
      _
    $region39: #{tpu_custom_call.1} parent=1 // pred_check_branch
      %269 = sbr.rel (0) target = $region41
    $region40: #{tpu_custom_call.1} parent=1 // pred_region
      %270 = dma.done [#allocation5], 128
    $region41: #{tpu_custom_call.1} parent=1 // pred_fallthru
      _
    %271 = vsyncpa [#allocation3], 1
    %272 = vsyncpa [#allocation5], 1

</llo_original>
